<compile_context>
chip_gen: v5e
topology: v5e:2x2
jax: 0.10.0
libtpu: 0.0.40
codegen_flags: <defaults>
</compile_context>

<pallas_src>
import jax
import jax.numpy as jnp
from jax.experimental import pallas as pl
from jax.experimental.pallas import tpu as pltpu

# Hyper-parameters normally coming from `args` in the PyTorch script.
DECAY = 0.2
THRESH = 0.5
# (lens only affects ActFun.backward's surrogate gradient; forward-only here.)


def _mem_skip_update_kernel(x_ref, mem_ref, spike_ref, mask_ref,
                            new_mem_ref, new_spike_ref):
    x = x_ref[...]            # (TB, H)
    mem = mem_ref[...]        # (TB, H)
    spike = spike_ref[...]    # (TB, H)
    mask = mask_ref[...]      # (1, H) -> broadcasts over the batch tile

    # mem' = mem*decay*(1-spike) + x   where mask != 0, else keep previous mem.
    updated = mem * (DECAY * (1.0 - spike)) + x
    new_mem = jnp.where(mask != 0.0, updated, mem)
    # spike' = (mem' > thresh).float() * mask  ==  where(mem' > thresh, mask, 0)
    new_spike = jnp.where(new_mem > THRESH, mask, jnp.zeros_like(new_mem))

    new_mem_ref[...] = new_mem
    new_spike_ref[...] = new_spike


def _choose_row_tile(B, H, itemsize, per_buffer_budget=2 << 20):
    """Pick a batch tile so each double-buffered (TB, H) stream is ~<=2 MiB."""
    # Small problems (or tiny batch): one block equal to the full array dims,
    # which always satisfies the (8, 128) block-shape constraint.
    if B * H * itemsize <= per_buffer_budget or B <= 8:
        return B
    rows = per_buffer_budget // (H * itemsize)
    rows = max(8, (rows // 8) * 8)      # sublane-aligned batch tiles
    return min(rows, B)


def mem_skip_update(x, mem, spike, mask, *, row_tile=None):
    """Pallas TPU implementation of mem_skip_update.forward.

    x, mem, spike : (B, H) float32
    mask          : (H,)   float32
    returns (new_mem, new_spike), both (B, H) float32
    """
    B, H = mem.shape
    mask2d = mask.reshape(1, H)
    itemsize = jnp.dtype(mem.dtype).itemsize

    if row_tile is None:
        row_tile = _choose_row_tile(B, H, itemsize)
    tb = int(row_tile)
    grid = (pl.cdiv(B, tb),)

    # Hidden axis never tiled -> output last dim is the full (lane-dense) H.
    tile_spec = pl.BlockSpec((tb, H), lambda i: (i, 0))
    mask_spec = pl.BlockSpec((1, H), lambda i: (0, 0))   # resident across grid

    out_shape = (
        jax.ShapeDtypeStruct((B, H), mem.dtype),
        jax.ShapeDtypeStruct((B, H), mem.dtype),
    )

    cost = pl.CostEstimate(
        flops=4 * B * H,
        transcendentals=0,
        bytes_accessed=5 * B * H * itemsize + H * itemsize,
    )

    new_mem, new_spike = pl.pallas_call(
        _mem_skip_update_kernel,
        out_shape=out_shape,
        grid=grid,
        in_specs=[tile_spec, tile_spec, tile_spec, mask_spec],
        out_specs=(tile_spec, tile_spec),
        # Recurrent state update: mem -> new_mem, spike -> new_spike in place
        # when the caller donates the buffers.
        input_output_aliases={1: 0, 2: 1},
        compiler_params=pltpu.CompilerParams(
            dimension_semantics=("parallel",),      # megacore sharding on v7x
            vmem_limit_bytes=32 * 1024 * 1024,
        ),
        cost_estimate=cost,
    )(x, mem, spike, mask2d)
    return new_mem, new_spike


def _reference(x, mem, spike, mask):
    mask = jnp.broadcast_to(mask.reshape(1, -1), mem.shape)
    pre_mem = mem
    new_mem = mem * DECAY * (1.0 - spike) + x
    new_mem = jnp.where(mask == 0.0, pre_mem, new_mem)
    new_spike = (new_mem > THRESH).astype(new_mem.dtype) * mask
    return new_mem, new_spike


if __name__ == "__main__":
    keys = jax.random.split(jax.random.PRNGKey(0), 8)

    # --- Test 1: tiny shape (single grid step; blocks == full array dims) ---
    B, H = 2, 32
    x = jax.random.normal(keys[0], (B, H), dtype=jnp.float32)
    mem = jax.random.normal(keys[1], (B, H), dtype=jnp.float32)
    spike = (jax.random.uniform(keys[2], (B, H)) > 0.5).astype(jnp.float32)
    mask = (jax.random.uniform(keys[3], (H,)) > 0.3).astype(jnp.float32)

    ref_mem, ref_spike = _reference(x, mem, spike, mask)
    new_mem, new_spike = mem_skip_update(x, mem, spike, mask)
    jax.block_until_ready((new_mem, new_spike))
    assert jnp.allclose(new_mem, ref_mem, atol=1e-6), "mem mismatch (small)"
    assert jnp.allclose(new_spike, ref_spike, atol=1e-6), "spike mismatch (small)"

    # --- Test 2: exercise the tiled / pipelined path (2 batch tiles) ---
    B2, H2 = 16, 128
    x2 = jax.random.normal(keys[4], (B2, H2), dtype=jnp.float32)
    mem2 = jax.random.normal(keys[5], (B2, H2), dtype=jnp.float32)
    spike2 = (jax.random.uniform(keys[6], (B2, H2)) > 0.5).astype(jnp.float32)
    mask2 = (jax.random.uniform(keys[7], (H2,)) > 0.3).astype(jnp.float32)

    ref_mem2, ref_spike2 = _reference(x2, mem2, spike2, mask2)
    new_mem2, new_spike2 = mem_skip_update(x2, mem2, spike2, mask2, row_tile=8)
    jax.block_until_ready((new_mem2, new_spike2))
    assert jnp.allclose(new_mem2, ref_mem2, atol=1e-6), "mem mismatch (tiled)"
    assert jnp.allclose(new_spike2, ref_spike2, atol=1e-6), "spike mismatch (tiled)"

    # TODO(synk): bf16 I/O variant (halves HBM traffic, biggest win on v5e) is
    # left out to keep exact f32 parity with the PyTorch reference.
    print("KERNEL_OK")
</pallas_src>

<mosaic_0001>
module attributes {stable_mosaic.version = 11 : i64} {
  func.func @_mem_skip_update_kernel(%arg0: i32, %arg1: memref<2x32xf32, #tpu.memory_space<vmem>>, %arg2: memref<2x32xf32, #tpu.memory_space<vmem>>, %arg3: memref<2x32xf32, #tpu.memory_space<vmem>>, %arg4: memref<1x32xf32, #tpu.memory_space<vmem>>, %arg5: memref<2x32xf32, #tpu.memory_space<vmem>>, %arg6: memref<2x32xf32, #tpu.memory_space<vmem>>) attributes {dimension_semantics = [#tpu.dimension_semantics<parallel>], iteration_bounds = array<i64: 1>, scalar_prefetch = 0 : i64, scratch_operands = 0 : i64, tpu.core_type = #tpu.core_type<tc>, window_params = [{transform_indices = @transform_0, window_bounds = array<i64: 2, 32>}, {transform_indices = @transform_1, window_bounds = array<i64: 2, 32>}, {transform_indices = @transform_2, window_bounds = array<i64: 2, 32>}, {pipeline_mode = #tpu.pipeline_mode<synchronous>, transform_indices = @transform_3, window_bounds = array<i64: 1, 32>}, {transform_indices = @transform_4, window_bounds = array<i64: 2, 32>}, {transform_indices = @transform_5, window_bounds = array<i64: 2, 32>}]} {
    %c0 = arith.constant 0 : index
    %c0_0 = arith.constant 0 : index
    %0 = vector.load %arg1[%c0, %c0_0] : memref<2x32xf32, #tpu.memory_space<vmem>>, vector<2x32xf32>
    %c0_1 = arith.constant 0 : index
    %c0_2 = arith.constant 0 : index
    %1 = vector.load %arg2[%c0_1, %c0_2] : memref<2x32xf32, #tpu.memory_space<vmem>>, vector<2x32xf32>
    %c0_3 = arith.constant 0 : index
    %c0_4 = arith.constant 0 : index
    %2 = vector.load %arg3[%c0_3, %c0_4] : memref<2x32xf32, #tpu.memory_space<vmem>>, vector<2x32xf32>
    %c0_5 = arith.constant 0 : index
    %c0_6 = arith.constant 0 : index
    %3 = vector.load %arg4[%c0_5, %c0_6] : memref<1x32xf32, #tpu.memory_space<vmem>>, vector<1x32xf32>
    %cst = arith.constant 1.000000e+00 : f32
    %4 = vector.broadcast %cst : f32 to vector<2x32xf32>
    %5 = arith.subf %4, %2 : vector<2x32xf32>
    %cst_7 = arith.constant 2.000000e-01 : f32
    %6 = vector.broadcast %cst_7 : f32 to vector<2x32xf32>
    %7 = arith.mulf %6, %5 : vector<2x32xf32>
    %8 = arith.mulf %1, %7 : vector<2x32xf32>
    %9 = arith.addf %8, %0 : vector<2x32xf32>
    %cst_8 = arith.constant 0.000000e+00 : f32
    %10 = vector.broadcast %cst_8 : f32 to vector<1x32xf32>
    %11 = arith.cmpf one, %3, %10 : vector<1x32xf32>
    %12 = vector.shape_cast %11 : vector<1x32xi1> to vector<1x32xi1>
    %13 = vector.broadcast %12 : vector<1x32xi1> to vector<2x32xi1>
    %14 = arith.select %13, %9, %1 : vector<2x32xi1>, vector<2x32xf32>
    %cst_9 = arith.constant 5.000000e-01 : f32
    %15 = vector.broadcast %cst_9 : f32 to vector<2x32xf32>
    %16 = arith.cmpf ogt, %14, %15 : vector<2x32xf32>
    %cst_10 = arith.constant 0.000000e+00 : f32
    %17 = vector.broadcast %cst_10 : f32 to vector<2x32xf32>
    %18 = vector.shape_cast %3 : vector<1x32xf32> to vector<1x32xf32>
    %19 = vector.broadcast %18 : vector<1x32xf32> to vector<2x32xf32>
    %20 = arith.select %16, %19, %17 : vector<2x32xi1>, vector<2x32xf32>
    %c0_11 = arith.constant 0 : index
    %c0_12 = arith.constant 0 : index
    %21 = vector.load %arg5[%c0_11, %c0_12] : memref<2x32xf32, #tpu.memory_space<vmem>>, vector<2x32xf32>
    tpu.vector_store %arg5[%c0_11, %c0_12], %14 {strides = array<i32>} : memref<2x32xf32, #tpu.memory_space<vmem>>, vector<2x32xf32>,
    %c0_13 = arith.constant 0 : index
    %c0_14 = arith.constant 0 : index
    %22 = vector.load %arg6[%c0_13, %c0_14] : memref<2x32xf32, #tpu.memory_space<vmem>>, vector<2x32xf32>
    tpu.vector_store %arg6[%c0_13, %c0_14], %20 {strides = array<i32>} : memref<2x32xf32, #tpu.memory_space<vmem>>, vector<2x32xf32>,
    return
  }
  func.func @transform_0(%arg0: i32) -> (i32, i32) {
    %c0_i32 = arith.constant 0 : i32
    %c0_i32_0 = arith.constant 0 : i32
    return %arg0, %c0_i32 : i32, i32
  }
  func.func @transform_1(%arg0: i32) -> (i32, i32) {
    %c0_i32 = arith.constant 0 : i32
    %c0_i32_0 = arith.constant 0 : i32
    return %arg0, %c0_i32 : i32, i32
  }
  func.func @transform_2(%arg0: i32) -> (i32, i32) {
    %c0_i32 = arith.constant 0 : i32
    %c0_i32_0 = arith.constant 0 : i32
    return %arg0, %c0_i32 : i32, i32
  }
  func.func @transform_3(%arg0: i32) -> (i32, i32) {
    %c0_i32 = arith.constant 0 : i32
    %c0_i32_0 = arith.constant 0 : i32
    %c0_i32_1 = arith.constant 0 : i32
    return %c0_i32, %c0_i32_0 : i32, i32
  }
  func.func @transform_4(%arg0: i32) -> (i32, i32) {
    %c0_i32 = arith.constant 0 : i32
    %c0_i32_0 = arith.constant 0 : i32
    return %arg0, %c0_i32 : i32, i32
  }
  func.func @transform_5(%arg0: i32) -> (i32, i32) {
    %c0_i32 = arith.constant 0 : i32
    %c0_i32_0 = arith.constant 0 : i32
    return %arg0, %c0_i32 : i32, i32
  }
}

</mosaic_0001>

<llo_original>
// kernel: tpu_custom_call.1
$region0: #{tpu_custom_call.1}
  #allocation0 [shape = 'u32[]', space=smem, size = 0x4, offset = 0x4, fixed_abs, tag = 'smem constant byte address 0x4 - core index']
  #allocation1 [shape = 'u32[72,128]{1,0:T(1,128)}', space=vmem, size = 0x9000, scoped, tag = 'internal scratch']
  %s0 = inlined_call_operand.vmem [shape: f32[2,32], index: 0, kind: input, shape index: {}]
  %s1 = inlined_call_operand.hbm [shape: f32[2,32], index: 1, kind: input, shape index: {}, may-alias: {1,4}]
  %s2 = inlined_call_operand.hbm [shape: f32[2,32], index: 2, kind: input, shape index: {}, may-alias: {2,5}]
  %s3 = inlined_call_operand.vmem [shape: f32[1,32], index: 3, kind: input, shape index: {}]
  %s4 = inlined_call_operand.hbm [shape: f32[2,32], index: 4, kind: output, shape index: {0}, may-alias: {1,4}]
  %s5 = inlined_call_operand.hbm [shape: f32[2,32], index: 5, kind: output, shape index: {1}, may-alias: {2,5}]
  %6 = xla_tuple %s4, %s5
  %s7 = sld [smem:[#allocation0]]
  $region42: #{tpu_custom_call.1} parent=0
    _
  %s9 = ssub.s32 1, %s7
  %s10 = scalar_select 0, %s9, %s7
  $region1: #{tpu_custom_call.1} parent=0
    #allocation2 [shape = 'u8[1024]{0}', space=vmem, size = 0x400, scoped, tag = 'input window, operand 1, single buffered']
    #allocation3 [shape = 's32[1]{0}', space=sflag, size = 0x4, scoped, tag = 'scoped memory for tpu_custom_call.1']
    #allocation4 [shape = 's32[1]{0}', space=sflag, size = 0x4, scoped, tag = 'scoped memory for tpu_custom_call.1']
    #allocation5 [shape = 'u8[1024]{0}', space=vmem, size = 0x400, scoped, tag = 'input window, operand 2, single buffered']
    #allocation6 [shape = 's32[1]{0}', space=sflag, size = 0x4, scoped, tag = 'scoped memory for tpu_custom_call.1']
    #allocation7 [shape = 'u8[1024]{0}', space=vmem, size = 0x400, scoped, tag = 'output window, operand 0, single buffered']
    #allocation8 [shape = 'u8[1024]{0}', space=vmem, size = 0x400, scoped, tag = 'output window, operand 1, single buffered']
    #allocation9 [shape = 's32[1]{0}', space=sflag, size = 0x4, scoped, tag = 'scoped memory for tpu_custom_call.1']
    %11 = vsyncpa [#allocation3], 0
    %12 = vsyncpa [#allocation6], 0
    %13 = vsyncpa [#allocation4], 0
    %14 = vsyncpa [#allocation9], 0
    // Predicated region
    $region2: #{tpu_custom_call.1} parent=1 // pred_check
      _
    $region3: #{tpu_custom_call.1} parent=1 // pred_check_branch
      %16 = sbr.rel (0) target = $region5
    $region4: #{tpu_custom_call.1} parent=1 // pred_region
      _
    $region5: #{tpu_custom_call.1} parent=1 // pred_fallthru
      _
    // Predicated region
    $region6: #{tpu_custom_call.1} parent=1 // pred_check
      _
    $region7: #{tpu_custom_call.1} parent=1 // pred_check_branch
      %18 = sbr.rel (0) target = $region9
    $region8: #{tpu_custom_call.1} parent=1 // pred_region
      %20 = vsyncadd [#allocation3], 0
      %s22 = sshll.u32 %s1, 4
      %s23 = int_to_ptr.hbm [resolvable:$true] %s22
      %s24 = sshll.u32 [#allocation2], 4
      %s25 = int_to_ptr.vmem [resolvable:$true] %s24
      %27 = dma.hbm_to_vmem [thread:$0]  %s23, 32, %s25, [#allocation3]
    $region9: #{tpu_custom_call.1} parent=1 // pred_fallthru
      _
    // Predicated region
    $region10: #{tpu_custom_call.1} parent=1 // pred_check
      _
    $region11: #{tpu_custom_call.1} parent=1 // pred_check_branch
      %29 = sbr.rel (0) target = $region13
    $region12: #{tpu_custom_call.1} parent=1 // pred_region
      %31 = vsyncadd [#allocation6], 0
      %s33 = sshll.u32 %s2, 4
      %s34 = int_to_ptr.hbm [resolvable:$true] %s33
      %s35 = sshll.u32 [#allocation5], 4
      %s36 = int_to_ptr.vmem [resolvable:$true] %s35
      %38 = dma.hbm_to_vmem [thread:$0]  %s34, 32, %s36, [#allocation6]
    $region13: #{tpu_custom_call.1} parent=1 // pred_fallthru
      _
    // Predicated region
    $region14: #{tpu_custom_call.1} parent=1 // pred_check
      _
    $region15: #{tpu_custom_call.1} parent=1 // pred_check_branch
      %40 = sbr.rel (0) target = $region17
    $region16: #{tpu_custom_call.1} parent=1 // pred_region
      _
    $region17: #{tpu_custom_call.1} parent=1 // pred_fallthru
      _
    // Predicated region
    $region18: #{tpu_custom_call.1} parent=1 // pred_check
      _
    $region19: #{tpu_custom_call.1} parent=1 // pred_check_branch
      %42 = sbr.rel (0) target = $region21
    $region20: #{tpu_custom_call.1} parent=1 // pred_region
      %44 = dma.done [#allocation3], 32
    $region21: #{tpu_custom_call.1} parent=1 // pred_fallthru
      _
    // Predicated region
    $region22: #{tpu_custom_call.1} parent=1 // pred_check
      _
    $region23: #{tpu_custom_call.1} parent=1 // pred_check_branch
      %46 = sbr.rel (0) target = $region25
    $region24: #{tpu_custom_call.1} parent=1 // pred_region
      %48 = dma.done [#allocation6], 32
    $region25: #{tpu_custom_call.1} parent=1 // pred_fallthru
      _
    %v49 = vld [vmem:[%s0] sm:$0x3]
    %v50 = vld [vmem:[#allocation2] sm:$0x3]
    %v51 = vld [vmem:[#allocation5] sm:$0x3]
    %v52 = vld [vmem:[%s3] sm:$0x1]
    %v53 = vsub.f32 1.0, %v51
    %v54 = vmul.f32 %v53, 0.2
    %v55 = vmul.f32 %v50, %v54
    %v56 = vadd.f32 %v55, %v49
    %vm57 = vcmp.ne.f32.partialorder %v52, 0.0
    %v58 = vsel %vm57, 1, 0
    %v59 = vperm.slane %v58, 0
    %vm60 = vcmp.eq.s32.totalorder %v59, 1
    %v61 = vsel %vm60, %v56, %v50
    %vm62 = vcmp.gt.f32.partialorder %v61, 0.5
    %v64 = vperm.slane %v52, 0
    %v66 = vsel %vm62, %v64, 0.0
    %vm67 = vcmask 254976
    %68 = vst.msk [vmem:[#allocation7] sm:$0x3] %vm67, %v61
    %69 = vst.msk [vmem:[#allocation8] sm:$0x3] %vm67, %v66
    // Predicated region
    $region26: #{tpu_custom_call.1} parent=1 // pred_check
      _
    $region27: #{tpu_custom_call.1} parent=1 // pred_check_branch
      %71 = sbr.rel (0) target = $region29
    $region28: #{tpu_custom_call.1} parent=1 // pred_region
      %73 = vsyncadd [#allocation4], 0
      %s75 = sshll.u32 [#allocation7], 4
      %s76 = int_to_ptr.vmem [resolvable:$true] %s75
      %s77 = sshll.u32 %s4, 4
      %s78 = int_to_ptr.hbm [resolvable:$true] %s77
      %80 = dma.vmem_to_hbm [thread:$0]  %s76, 32, %s78, [#allocation4]
    $region29: #{tpu_custom_call.1} parent=1 // pred_fallthru
      _
    // Predicated region
    $region30: #{tpu_custom_call.1} parent=1 // pred_check
      _
    $region31: #{tpu_custom_call.1} parent=1 // pred_check_branch
      %82 = sbr.rel (0) target = $region33
    $region32: #{tpu_custom_call.1} parent=1 // pred_region
      %84 = vsyncadd [#allocation9], 0
      %s86 = sshll.u32 [#allocation8], 4
      %s87 = int_to_ptr.vmem [resolvable:$true] %s86
      %s88 = sshll.u32 %s5, 4
      %s89 = int_to_ptr.hbm [resolvable:$true] %s88
      %91 = dma.vmem_to_hbm [thread:$0]  %s87, 32, %s89, [#allocation9]
    $region33: #{tpu_custom_call.1} parent=1 // pred_fallthru
      _
    // Predicated region
    $region34: #{tpu_custom_call.1} parent=1 // pred_check
      _
    $region35: #{tpu_custom_call.1} parent=1 // pred_check_branch
      %93 = sbr.rel (0) target = $region37
    $region36: #{tpu_custom_call.1} parent=1 // pred_region
      %95 = dma.done [#allocation4], 32
    $region37: #{tpu_custom_call.1} parent=1 // pred_fallthru
      _
    // Predicated region
    $region38: #{tpu_custom_call.1} parent=1 // pred_check
      _
    $region39: #{tpu_custom_call.1} parent=1 // pred_check_branch
      %97 = sbr.rel (0) target = $region41
    $region40: #{tpu_custom_call.1} parent=1 // pred_region
      %99 = dma.done [#allocation9], 32
    $region41: #{tpu_custom_call.1} parent=1 // pred_fallthru
      _
    %100 = vsyncpa [#allocation3], 1
    %101 = vsyncpa [#allocation6], 1
    %102 = vsyncpa [#allocation4], 1
    %103 = vsyncpa [#allocation9], 1

</llo_original>
